<compile_context>
chip_gen: v7x
topology: tpu7x:2x2x1
jax: 0.10.0
libtpu: 0.0.40
codegen_flags: <defaults>
</compile_context>

<pallas_src>
import functools

import jax
import jax.numpy as jnp
from jax.experimental import pallas as pl
from jax.experimental.pallas import tpu as pltpu


def _policy_value_kernel(state_ref, w1_ref, b1_ref, w2_ref, b2_ref, out_ref,
                         *, n_action):
    # Hidden layer: Linear + ReLU.  K = n_state is tiny but the MXU is nowhere
    # near the binding slot here (grid-step overhead / DMA are), so keep it on
    # jnp.dot.
    h = jnp.dot(state_ref[...], w1_ref[...],
                preferred_element_type=jnp.float32) + b1_ref[...]
    h = jnp.maximum(h, 0.0)

    # Fused (policy | value | zero-pad) head: one MXU push, one lane-dense
    # [tile_b, 128] slab -> unmasked 128-wide stores.
    fused = jnp.dot(h, w2_ref[...],
                    preferred_element_type=jnp.float32) + b2_ref[...]

    # Softmax over the first n_action columns only.  The value column and the
    # zero pad columns are masked to -inf in the max/sum (exp contributes
    # exactly 0) and pass through untouched in the output.
    col = jax.lax.broadcasted_iota(jnp.int32, fused.shape, 1)
    is_logit = col < n_action

    shifted = jnp.where(is_logit, fused, -jnp.inf)
    m = jnp.max(shifted, axis=-1, keepdims=True)
    e = jnp.exp(shifted - m)                       # exp(-inf) == 0 for non-logit cols
    denom = jnp.sum(e, axis=-1, keepdims=True)
    probs = e / denom                              # exact divide: rows sum to 1

    out_ref[...] = jnp.where(is_logit, probs, fused)


_MAX_TILE_B = 4096


def _pick_tile_b(B):
    """Batch tile: as large as possible (<= 4096, multiple of 8), but capped
    at round8(ceil(B/2)) so the batch grid has >= 2 steps whenever the batch
    is big enough to split across v7x's two TensorCores."""
    half = (B + 1) // 2
    half8 = ((half + 7) // 8) * 8
    return max(8, min(_MAX_TILE_B, half8))


def prepare_params(params):
    """One-time parameter prep (call ONCE, outside the per-forward path).

    Fuses the policy and value heads into a single [n_hidden, n_pad] weight /
    [1, n_pad] bias, zero-padded to a 128-lane-dense width.
    """
    w1, b1, wpi, bpi, wv, bv = params
    n_action = wpi.shape[1]
    n_out = n_action + 1
    n_pad = max(128, ((n_out + 127) // 128) * 128)   # pad to exactly 128 for small heads

    w2 = jnp.concatenate([wpi, wv], axis=1)          # [n_hidden, n_out]
    b2 = jnp.concatenate([bpi, bv], axis=1)          # [1, n_out]
    w2 = jnp.pad(w2, ((0, 0), (0, n_pad - n_out)))   # zero columns -> 0 logits (masked)
    b2 = jnp.pad(b2, ((0, 0), (0, n_pad - n_out)))

    return dict(w1=w1, b1=b1, w2=w2, b2=b2, n_action=n_action, n_pad=n_pad)


def discrete_mlp_policy_value(state, prepped):
    """state: [B, n_state] f32.  Returns (probs [B, n_action], value [B, 1])."""
    w1, b1, w2, b2 = prepped["w1"], prepped["b1"], prepped["w2"], prepped["b2"]
    n_action = prepped["n_action"]
    n_pad = prepped["n_pad"]

    B, n_state = state.shape
    n_hidden = w1.shape[1]

    tile_b = _pick_tile_b(B)
    grid_b = pl.cdiv(B, tile_b)
    B_pad = grid_b * tile_b
    if B_pad != B:
        # Pad the batch instead of falling back to a single full-B block.
        state = jnp.pad(state, ((0, B_pad - B), (0, 0)))

    kernel = functools.partial(_policy_value_kernel, n_action=n_action)

    flops = 2 * B_pad * (n_state * n_hidden + n_hidden * n_pad)
    bytes_accessed = 4 * (B_pad * n_state + n_state * n_hidden + n_hidden
                          + n_hidden * n_pad + n_pad + B_pad * n_pad)
    cost = pl.CostEstimate(flops=flops,
                           transcendentals=B_pad * n_pad,
                           bytes_accessed=bytes_accessed)

    # VMEM budget: streamed state/out tiles are lane-padded to 128 lanes and
    # double-buffered (~tile_b * 2 KiB total) plus the resident weights.
    # Keep the explicit limit well under v7x's 64 MiB physical VMEM.
    vmem_needed = 4 * tile_b * 128 * 2 * 2 + (2 << 20)
    vmem_limit = max(16 << 20, min(48 << 20, 2 * vmem_needed))

    fused_out = pl.pallas_call(
        kernel,
        out_shape=jax.ShapeDtypeStruct((B_pad, n_pad), jnp.float32),
        grid=(grid_b,),
        in_specs=[
            # Streamed per-batch tile.
            pl.BlockSpec((tile_b, n_state), lambda i: (i, 0)),
            # Weights / biases: same block every step -> VMEM-resident.
            pl.BlockSpec(w1.shape, lambda i: (0, 0)),
            pl.BlockSpec(b1.shape, lambda i: (0, 0)),
            pl.BlockSpec(w2.shape, lambda i: (0, 0)),
            pl.BlockSpec(b2.shape, lambda i: (0, 0)),
        ],
        # Lane-dense output slab: (tile_b, 128) -> unmasked stores.
        out_specs=pl.BlockSpec((tile_b, n_pad), lambda i: (i, 0)),
        compiler_params=pltpu.CompilerParams(
            dimension_semantics=("parallel",),
            vmem_limit_bytes=vmem_limit),
        cost_estimate=cost,
    )(state, w1, b1, w2, b2)

    probs = fused_out[:B, :n_action]
    value = fused_out[:B, n_action:n_action + 1]
    return probs, value


def init_params(key, n_state, n_hidden, n_action):
    """Deterministic PyTorch-Linear-style uniform init."""
    ks = jax.random.split(key, 6)

    def linear(kw, kb, fan_in, fan_out):
        bound = 1.0 / jnp.sqrt(fan_in)
        w = jax.random.uniform(kw, (fan_in, fan_out), jnp.float32, -bound, bound)
        b = jax.random.uniform(kb, (1, fan_out), jnp.float32, -bound, bound)
        return w, b

    w1, b1 = linear(ks[0], ks[1], n_state, n_hidden)
    wpi, bpi = linear(ks[2], ks[3], n_hidden, n_action)
    wv, bv = linear(ks[4], ks[5], n_hidden, 1)
    return w1, b1, wpi, bpi, wv, bv


if __name__ == "__main__":
    key = jax.random.PRNGKey(0)
    k_param, k_state = jax.random.split(key)

    # n_hidden=128 matches the module default and is lane-aligned.
    B, n_state, n_hidden, n_action = 2, 4, 128, 6

    raw_params = init_params(k_param, n_state, n_hidden, n_action)
    prepped = prepare_params(raw_params)            # one-time prep, not per-call
    state = jax.random.normal(k_state, (B, n_state), jnp.float32)

    probs, value = discrete_mlp_policy_value(state, prepped)
    jax.block_until_ready((probs, value))

    # Sanity: shapes match torch module outputs; softmax rows sum to 1
    # (exact divide -> tight tolerance).
    assert probs.shape == (B, n_action)
    assert value.shape == (B, 1)
    assert jnp.allclose(jnp.sum(probs, axis=-1), 1.0, atol=1e-5)

    # Reference check in plain JAX.
    w1, b1, wpi, bpi, wv, bv = raw_params
    h = jnp.maximum(state @ w1 + b1, 0.0)
    ref_probs = jax.nn.softmax(h @ wpi + bpi, axis=-1)
    ref_value = h @ wv + bv
    assert jnp.allclose(probs, ref_probs, atol=1e-5)
    assert jnp.allclose(value, ref_value, atol=1e-4)

    print("KERNEL_OK")
</pallas_src>

<mosaic_0001>
module attributes {stable_mosaic.version = 11 : i64} {
  func.func @_policy_value_kernel(%arg0: i32, %arg1: memref<8x4xf32, #tpu.memory_space<vmem>>, %arg2: memref<4x128xf32, #tpu.memory_space<vmem>>, %arg3: memref<1x128xf32, #tpu.memory_space<vmem>>, %arg4: memref<128x128xf32, #tpu.memory_space<vmem>>, %arg5: memref<1x128xf32, #tpu.memory_space<vmem>>, %arg6: memref<8x128xf32, #tpu.memory_space<vmem>>) attributes {dimension_semantics = [#tpu.dimension_semantics<parallel>], iteration_bounds = array<i64: 1>, scalar_prefetch = 0 : i64, scratch_operands = 0 : i64, tpu.core_type = #tpu.core_type<tc>, window_params = [{transform_indices = @transform_0, window_bounds = array<i64: 8, 4>}, {pipeline_mode = #tpu.pipeline_mode<synchronous>, transform_indices = @transform_1, window_bounds = array<i64: 4, 128>}, {pipeline_mode = #tpu.pipeline_mode<synchronous>, transform_indices = @transform_2, window_bounds = array<i64: 1, 128>}, {pipeline_mode = #tpu.pipeline_mode<synchronous>, transform_indices = @transform_3, window_bounds = array<i64: 128, 128>}, {pipeline_mode = #tpu.pipeline_mode<synchronous>, transform_indices = @transform_4, window_bounds = array<i64: 1, 128>}, {transform_indices = @transform_5, window_bounds = array<i64: 8, 128>}]} {
    %c0 = arith.constant 0 : index
    %c0_0 = arith.constant 0 : index
    %0 = vector.load %arg1[%c0, %c0_0] : memref<8x4xf32, #tpu.memory_space<vmem>>, vector<8x4xf32>
    %c0_1 = arith.constant 0 : index
    %c0_2 = arith.constant 0 : index
    %1 = vector.load %arg2[%c0_1, %c0_2] : memref<4x128xf32, #tpu.memory_space<vmem>>, vector<4x128xf32>
    %cst = arith.constant dense<0.000000e+00> : vector<8x128xf32>
    %2 = tpu.matmul %0, %1, %cst {dimension_numbers = #tpu.dot_dimension_numbers<[1], [0], [0], [1], [0, 0, 1, 1], [], []>} : vector<8x4xf32>, vector<4x128xf32>, vector<8x128xf32> -> vector<8x128xf32>
    %c0_3 = arith.constant 0 : index
    %c0_4 = arith.constant 0 : index
    %3 = vector.load %arg3[%c0_3, %c0_4] : memref<1x128xf32, #tpu.memory_space<vmem>>, vector<1x128xf32>
    %4 = vector.broadcast %3 : vector<1x128xf32> to vector<8x128xf32>
    %5 = arith.addf %2, %4 : vector<8x128xf32>
    %cst_5 = arith.constant 0.000000e+00 : f32
    %6 = vector.broadcast %cst_5 : f32 to vector<8x128xf32>
    %7 = arith.maximumf %5, %6 : vector<8x128xf32>
    %c0_6 = arith.constant 0 : index
    %c0_7 = arith.constant 0 : index
    %8 = vector.load %arg4[%c0_6, %c0_7] : memref<128x128xf32, #tpu.memory_space<vmem>>, vector<128x128xf32>
    %cst_8 = arith.constant dense<0.000000e+00> : vector<8x128xf32>
    %9 = tpu.matmul %7, %8, %cst_8 {dimension_numbers = #tpu.dot_dimension_numbers<[1], [0], [0], [1], [0, 0, 1, 1], [], []>} : vector<8x128xf32>, vector<128x128xf32>, vector<8x128xf32> -> vector<8x128xf32>
    %c0_9 = arith.constant 0 : index
    %c0_10 = arith.constant 0 : index
    %10 = vector.load %arg5[%c0_9, %c0_10] : memref<1x128xf32, #tpu.memory_space<vmem>>, vector<1x128xf32>
    %11 = vector.broadcast %10 : vector<1x128xf32> to vector<8x128xf32>
    %12 = arith.addf %9, %11 : vector<8x128xf32>
    %13 = tpu.iota {dimensions = array<i32: 1>} : vector<8x128xi32>
    %c6_i32 = arith.constant 6 : i32
    %14 = vector.broadcast %c6_i32 : i32 to vector<8x128xi32>
    %15 = arith.cmpi slt, %13, %14 : vector<8x128xi32>
    %cst_11 = arith.constant 0xFF800000 : f32
    %16 = vector.broadcast %cst_11 : f32 to vector<8x128xf32>
    %17 = arith.select %15, %12, %16 : vector<8x128xi1>, vector<8x128xf32>
    %cst_12 = arith.constant dense<0xFF800000> : vector<8xf32>
    %18 = vector.multi_reduction <maximumf>, %17, %cst_12 [1] : vector<8x128xf32> to vector<8xf32>
    %19 = vector.shape_cast %18 : vector<8xf32> to vector<8x1xf32>
    %20 = vector.broadcast %19 : vector<8x1xf32> to vector<8x128xf32>
    %21 = arith.subf %17, %20 : vector<8x128xf32>
    %22 = math.exp %21 : vector<8x128xf32>
    %cst_13 = arith.constant dense<0.000000e+00> : vector<8xf32>
    %23 = vector.multi_reduction <add>, %22, %cst_13 [1] : vector<8x128xf32> to vector<8xf32>
    %24 = vector.shape_cast %23 : vector<8xf32> to vector<8x1xf32>
    %25 = vector.broadcast %24 : vector<8x1xf32> to vector<8x128xf32>
    %26 = arith.divf %22, %25 : vector<8x128xf32>
    %27 = arith.select %15, %26, %12 : vector<8x128xi1>, vector<8x128xf32>
    %c0_14 = arith.constant 0 : index
    %c0_15 = arith.constant 0 : index
    %28 = vector.load %arg6[%c0_14, %c0_15] : memref<8x128xf32, #tpu.memory_space<vmem>>, vector<8x128xf32>
    tpu.vector_store %arg6[%c0_14, %c0_15], %27 {strides = array<i32>} : memref<8x128xf32, #tpu.memory_space<vmem>>, vector<8x128xf32>,
    return
  }
  func.func @transform_0(%arg0: i32) -> (i32, i32) {
    %c0_i32 = arith.constant 0 : i32
    %c0_i32_0 = arith.constant 0 : i32
    return %arg0, %c0_i32 : i32, i32
  }
  func.func @transform_1(%arg0: i32) -> (i32, i32) {
    %c0_i32 = arith.constant 0 : i32
    %c0_i32_0 = arith.constant 0 : i32
    %c0_i32_1 = arith.constant 0 : i32
    return %c0_i32, %c0_i32_0 : i32, i32
  }
  func.func @transform_2(%arg0: i32) -> (i32, i32) {
    %c0_i32 = arith.constant 0 : i32
    %c0_i32_0 = arith.constant 0 : i32
    %c0_i32_1 = arith.constant 0 : i32
    return %c0_i32, %c0_i32_0 : i32, i32
  }
  func.func @transform_3(%arg0: i32) -> (i32, i32) {
    %c0_i32 = arith.constant 0 : i32
    %c0_i32_0 = arith.constant 0 : i32
    %c0_i32_1 = arith.constant 0 : i32
    return %c0_i32, %c0_i32_0 : i32, i32
  }
  func.func @transform_4(%arg0: i32) -> (i32, i32) {
    %c0_i32 = arith.constant 0 : i32
    %c0_i32_0 = arith.constant 0 : i32
    %c0_i32_1 = arith.constant 0 : i32
    return %c0_i32, %c0_i32_0 : i32, i32
  }
  func.func @transform_5(%arg0: i32) -> (i32, i32) {
    %c0_i32 = arith.constant 0 : i32
    %c0_i32_0 = arith.constant 0 : i32
    return %arg0, %c0_i32 : i32, i32
  }
}

</mosaic_0001>

<llo_original>
// kernel: tpu_custom_call.1
$region0: #{tpu_custom_call.1}
  #allocation0 [shape = 'u32[]', space=smem, size = 0x4, offset = 0x4, fixed_abs, tag = 'smem constant byte address 0x4 - core index']
  #allocation1 [shape = 'u32[144,128]{1,0:T(1,128)}', space=vmem, size = 0x12000, scoped, tag = 'internal scratch']
  %s0 = inlined_call_operand.vmem [shape: f32[8,4], index: 0, kind: input, shape index: {}]
  %s1 = inlined_call_operand.vmem [shape: f32[4,128], index: 1, kind: input, shape index: {}]
  %s2 = inlined_call_operand.vmem [shape: f32[1,128], index: 2, kind: input, shape index: {}]
  %s3 = inlined_call_operand.hbm [shape: f32[128,128], index: 3, kind: input, shape index: {}]
  %s4 = inlined_call_operand.vmem [shape: f32[1,128], index: 4, kind: input, shape index: {}]
  %s5 = inlined_call_operand.hbm [shape: f32[8,128], index: 5, kind: output, shape index: {}]
  %s6 = sld [smem:[#allocation0]]
  $region34: #{tpu_custom_call.1} parent=0
    _
  %s8 = ssub.s32 1, %s6
  %s9 = scalar_select 0, %s8, %s6
  $region1: #{tpu_custom_call.1} parent=0
    #allocation2 [shape = 'u8[65536]{0}', space=vmem, size = 0x10000, scoped, tag = 'input window, operand 3, single buffered']
    #allocation3 [shape = 's32[1]{0}', space=sflag, size = 0x4, scoped, tag = 'scoped memory for tpu_custom_call.1']
    #allocation4 [shape = 's32[1]{0}', space=sflag, size = 0x4, scoped, tag = 'scoped memory for tpu_custom_call.1']
    #allocation5 [shape = 'u8[4096]{0}', space=vmem, size = 0x1000, scoped, tag = 'output window, operand 0, single buffered']
    %10 = vsyncpa [#allocation3], 0
    %11 = vsyncpa [#allocation4], 0
    // Predicated region
    $region2: #{tpu_custom_call.1} parent=1 // pred_check
      _
    $region3: #{tpu_custom_call.1} parent=1 // pred_check_branch
      %13 = sbr.rel (0) target = $region5
    $region4: #{tpu_custom_call.1} parent=1 // pred_region
      _
    $region5: #{tpu_custom_call.1} parent=1 // pred_fallthru
      _
    // Predicated region
    $region6: #{tpu_custom_call.1} parent=1 // pred_check
      _
    $region7: #{tpu_custom_call.1} parent=1 // pred_check_branch
      %15 = sbr.rel (0) target = $region9
    $region8: #{tpu_custom_call.1} parent=1 // pred_region
      _
    $region9: #{tpu_custom_call.1} parent=1 // pred_fallthru
      _
    // Predicated region
    $region10: #{tpu_custom_call.1} parent=1 // pred_check
      _
    $region11: #{tpu_custom_call.1} parent=1 // pred_check_branch
      %17 = sbr.rel (0) target = $region13
    $region12: #{tpu_custom_call.1} parent=1 // pred_region
      _
    $region13: #{tpu_custom_call.1} parent=1 // pred_fallthru
      _
    // Predicated region
    $region14: #{tpu_custom_call.1} parent=1 // pred_check
      _
    $region15: #{tpu_custom_call.1} parent=1 // pred_check_branch
      %19 = sbr.rel (0) target = $region17
    $region16: #{tpu_custom_call.1} parent=1 // pred_region
      %s21 = ssub.s32 2048, 2048
      %22 = vsyncadd [#allocation3], %s21
      %s23 = sshll.u32 [#allocation2], 4
      %s24 = int_to_ptr.vmem [resolvable:$true] %s23
      %29 = dma.hbm_to_vmem [thread:$0]  %s3, 2048, %s24, [#allocation3], 128, 128, 8
    $region17: #{tpu_custom_call.1} parent=1 // pred_fallthru
      _
    // Predicated region
    $region18: #{tpu_custom_call.1} parent=1 // pred_check
      _
    $region19: #{tpu_custom_call.1} parent=1 // pred_check_branch
      %31 = sbr.rel (0) target = $region21
    $region20: #{tpu_custom_call.1} parent=1 // pred_region
      _
    $region21: #{tpu_custom_call.1} parent=1 // pred_fallthru
      _
    // Predicated region
    $region22: #{tpu_custom_call.1} parent=1 // pred_check
      _
    $region23: #{tpu_custom_call.1} parent=1 // pred_check_branch
      %33 = sbr.rel (0) target = $region25
    $region24: #{tpu_custom_call.1} parent=1 // pred_region
      %34 = dma.done [#allocation3], 2048
    $region25: #{tpu_custom_call.1} parent=1 // pred_fallthru
      _
    %v35 = vld [vmem:[%s0] sm:$0xff]
    %v36 = vld [vmem:[%s1] sm:$0xf]
    %v37 = vld [vmem:[%s2] sm:$0x1]
    %v39 = vlaneseq
    %v40 = vshrl.u32 %v39, 7
    %v41 = vsub.s32 0, %v40
    %v42 = vrot.slane %v37, %v41
    %vm44 = vcmask 31744
    %v46 = vsel %vm44, %v35, 0
    %vm48 = vcmask 1043456
    %v50 = vsel %vm48, %v36, 0
    %52 = vmatprep.subr.mxu0 0.0
    %53 = vmatpush1.msra.mxu0 %v50
    %54 = vmatprep.subr.mxu0 0.0
    %55 = vmatpush1.msra.mxu0 0.0
    %56 = vmatprep.subr.mxu0 0.0
    %57 = vmatpush1.msra.mxu0 0.0
    %58 = vmatprep.subr.mxu0 0.0
    %59 = vmatpush1.msra.mxu0 0.0
    %60 = vmatprep.subr.mxu0 0.0
    %61 = vmatpush1.msra.mxu0 0.0
    %62 = vmatprep.subr.mxu0 0.0
    %63 = vmatpush1.msra.mxu0 0.0
    %64 = vmatprep.subr.mxu0 0.0
    %65 = vmatpush1.msra.mxu0 0.0
    %66 = vmatprep.subr.mxu0 0.0
    %67 = vmatpush1.msra.mxu0 0.0
    %68 = vmatprep.subr.mxu0 0.0
    %69 = vmatpush1.msra.mxu0 0.0
    %70 = vmatprep.subr.mxu0 0.0
    %71 = vmatpush1.msra.mxu0 0.0
    %72 = vmatprep.subr.mxu0 0.0
    %73 = vmatpush1.msra.mxu0 0.0
    %74 = vmatprep.subr.mxu0 0.0
    %75 = vmatpush1.msra.mxu0 0.0
    %76 = vmatprep.subr.mxu0 0.0
    %77 = vmatpush1.msra.mxu0 0.0
    %78 = vmatprep.subr.mxu0 0.0
    %79 = vmatpush1.msra.mxu0 0.0
    %80 = vmatprep.subr.mxu0 0.0
    %81 = vmatpush1.msra.mxu0 0.0
    %82 = vmatprep.subr.mxu0 0.0
    %83 = vmatpush1.msra.mxu0 0.0
    %84 = vmatprep.subr.mxu0 0.0
    %85 = vmatpush1.msra.mxu0 0.0
    %86 = vmatprep.subr.mxu0 0.0
    %87 = vmatpush1.msra.mxu0 0.0
    %88 = vmatprep.subr.mxu0 0.0
    %89 = vmatpush1.msra.mxu0 0.0
    %90 = vmatprep.subr.mxu0 0.0
    %91 = vmatpush1.msra.mxu0 0.0
    %92 = vmatprep.subr.mxu0 0.0
    %93 = vmatpush1.msra.mxu0 0.0
    %94 = vmatprep.subr.mxu0 0.0
    %95 = vmatpush1.msra.mxu0 0.0
    %96 = vmatprep.subr.mxu0 0.0
    %97 = vmatpush1.msra.mxu0 0.0
    %98 = vmatprep.subr.mxu0 0.0
    %99 = vmatpush1.msra.mxu0 0.0
    %100 = vmatprep.subr.mxu0 0.0
    %101 = vmatpush1.msra.mxu0 0.0
    %102 = vmatprep.subr.mxu0 0.0
    %103 = vmatpush1.msra.mxu0 0.0
    %104 = vmatprep.subr.mxu0 0.0
    %105 = vmatpush1.msra.mxu0 0.0
    %106 = vmatprep.subr.mxu0 0.0
    %107 = vmatpush1.msra.mxu0 0.0
    %108 = vmatprep.subr.mxu0 0.0
    %109 = vmatpush1.msra.mxu0 0.0
    %110 = vmatprep.subr.mxu0 0.0
    %111 = vmatpush1.msra.mxu0 0.0
    %112 = vmatprep.subr.mxu0 0.0
    %113 = vmatpush1.msra.mxu0 0.0
    %114 = vmatprep.subr.mxu0 0.0
    %115 = vmatpush1.msra.mxu0 0.0
    %116 = vmatprep.mubr.f32.mxu0 0.0
    %117 = vmatmul.mubr.f32.gmra.mrb[0].mxu0 %v46
    %v118 = vpop.f32.mrb[0].mxu0
    %v119 = vadd.f32 %v42, %v118
    %v120 = vpop.f32.mrb[0].mxu0
    %121 = vdwg.mxu0
    %v122 = vmax.f32 %v119, 0.0
    %v123 = vld [vmem:[#allocation2] sm:$0xff]
    %v124 = vld [vmem:[#allocation2 + $0x8] sm:$0xff]
    %v125 = vld [vmem:[#allocation2 + $0x10] sm:$0xff]
    %v126 = vld [vmem:[#allocation2 + $0x18] sm:$0xff]
    %v127 = vld [vmem:[#allocation2 + $0x20] sm:$0xff]
    %v128 = vld [vmem:[#allocation2 + $0x28] sm:$0xff]
    %v129 = vld [vmem:[#allocation2 + $0x30] sm:$0xff]
    %v130 = vld [vmem:[#allocation2 + $0x38] sm:$0xff]
    %v131 = vld [vmem:[#allocation2 + $0x40] sm:$0xff]
    %v132 = vld [vmem:[#allocation2 + $0x48] sm:$0xff]
    %v133 = vld [vmem:[#allocation2 + $0x50] sm:$0xff]
    %v134 = vld [vmem:[#allocation2 + $0x58] sm:$0xff]
    %v135 = vld [vmem:[#allocation2 + $0x60] sm:$0xff]
    %v136 = vld [vmem:[#allocation2 + $0x68] sm:$0xff]
    %v137 = vld [vmem:[#allocation2 + $0x70] sm:$0xff]
    %v138 = vld [vmem:[#allocation2 + $0x78] sm:$0xff]
    %v139 = vld [vmem:[%s4] sm:$0x1]
    %v141 = vlaneseq
    %v142 = vshrl.u32 %v141, 7
    %v143 = vsub.s32 0, %v142
    %v144 = vrot.slane %v139, %v143
    %146 = vmatprep.subr.mxu0 0.0
    %147 = vmatpush1.msra.mxu0 %v123
    %148 = vmatprep.subr.mxu0 0.0
    %149 = vmatpush1.msra.mxu0 %v124
    %150 = vmatprep.subr.mxu0 0.0
    %151 = vmatpush1.msra.mxu0 %v125
    %152 = vmatprep.subr.mxu0 0.0
    %153 = vmatpush1.msra.mxu0 %v126
    %154 = vmatprep.subr.mxu0 0.0
    %155 = vmatpush1.msra.mxu0 %v127
    %156 = vmatprep.subr.mxu0 0.0
    %157 = vmatpush1.msra.mxu0 %v128
    %158 = vmatprep.subr.mxu0 0.0
    %159 = vmatpush1.msra.mxu0 %v129
    %160 = vmatprep.subr.mxu0 0.0
    %161 = vmatpush1.msra.mxu0 %v130
    %162 = vmatprep.subr.mxu0 0.0
    %163 = vmatpush1.msra.mxu0 %v131
    %164 = vmatprep.subr.mxu0 0.0
    %165 = vmatpush1.msra.mxu0 %v132
    %166 = vmatprep.subr.mxu0 0.0
    %167 = vmatpush1.msra.mxu0 %v133
    %168 = vmatprep.subr.mxu0 0.0
    %169 = vmatpush1.msra.mxu0 %v134
    %170 = vmatprep.subr.mxu0 0.0
    %171 = vmatpush1.msra.mxu0 %v135
    %172 = vmatprep.subr.mxu0 0.0
    %173 = vmatpush1.msra.mxu0 %v136
    %174 = vmatprep.subr.mxu0 0.0
    %175 = vmatpush1.msra.mxu0 %v137
    %176 = vmatprep.subr.mxu0 0.0
    %177 = vmatpush1.msra.mxu0 %v138
    %178 = vmatprep.subr.mxu0 0.0
    %179 = vmatpush1.msra.mxu0 0.0
    %180 = vmatprep.subr.mxu0 0.0
    %181 = vmatpush1.msra.mxu0 0.0
    %182 = vmatprep.subr.mxu0 0.0
    %183 = vmatpush1.msra.mxu0 0.0
    %184 = vmatprep.subr.mxu0 0.0
    %185 = vmatpush1.msra.mxu0 0.0
    %186 = vmatprep.subr.mxu0 0.0
    %187 = vmatpush1.msra.mxu0 0.0
    %188 = vmatprep.subr.mxu0 0.0
    %189 = vmatpush1.msra.mxu0 0.0
    %190 = vmatprep.subr.mxu0 0.0
    %191 = vmatpush1.msra.mxu0 0.0
    %192 = vmatprep.subr.mxu0 0.0
    %193 = vmatpush1.msra.mxu0 0.0
    %194 = vmatprep.subr.mxu0 0.0
    %195 = vmatpush1.msra.mxu0 0.0
    %196 = vmatprep.subr.mxu0 0.0
    %197 = vmatpush1.msra.mxu0 0.0
    %198 = vmatprep.subr.mxu0 0.0
    %199 = vmatpush1.msra.mxu0 0.0
    %200 = vmatprep.subr.mxu0 0.0
    %201 = vmatpush1.msra.mxu0 0.0
    %202 = vmatprep.subr.mxu0 0.0
    %203 = vmatpush1.msra.mxu0 0.0
    %204 = vmatprep.subr.mxu0 0.0
    %205 = vmatpush1.msra.mxu0 0.0
    %206 = vmatprep.subr.mxu0 0.0
    %207 = vmatpush1.msra.mxu0 0.0
    %208 = vmatprep.subr.mxu0 0.0
    %209 = vmatpush1.msra.mxu0 0.0
    %210 = vmatprep.mubr.f32.mxu0 0.0
    %211 = vmatmul.mubr.f32.gmra.mrb[0].mxu0 %v122
    %v212 = vpop.f32.mrb[0].mxu0
    %v213 = vadd.f32 %v144, %v212
    %v214 = vpop.f32.mrb[0].mxu0
    %215 = vdwg.mxu0
    %v216 = vlaneseq
    %v217 = vand.u32 %v216, 127
    %vm218 = vcmp.lt.s32.totalorder %v217, 6
    %v219 = vsel %vm218, %v213, -inf
    %220 = vmax.xlane.f32.xlu0 %v219
    %v221 = vpop.xlane.xlu0 %220
    %v222 = vsub.f32 %v219, %v221
    %v223 = vmul.f32 %v222, 1.442695
    %v224 = vpow.pop %v223
    %225 = vadd.xlane.f32.xlu0 %v224
    %v226 = vpop.xlane.xlu0 %225
    %v227 = vrcp.pop %v226
    %v228 = vmul.f32 %v224, %v227
    %v229 = vsel %vm218, %v228, %v213
    %230 = vst [vmem:[#allocation5] sm:$0xff] %v229
    // Predicated region
    $region26: #{tpu_custom_call.1} parent=1 // pred_check
      _
    $region27: #{tpu_custom_call.1} parent=1 // pred_check_branch
      %232 = sbr.rel (0) target = $region29
    $region28: #{tpu_custom_call.1} parent=1 // pred_region
      %s234 = ssub.s32 128, 128
      %235 = vsyncadd [#allocation4], %s234
      %s237 = sshll.u32 [#allocation5], 4
      %s238 = int_to_ptr.vmem [resolvable:$true] %s237
      %240 = dma.vmem_to_hbm [thread:$0]  %s238, 128, %s5, [#allocation4]
    $region29: #{tpu_custom_call.1} parent=1 // pred_fallthru
      _
    // Predicated region
    $region30: #{tpu_custom_call.1} parent=1 // pred_check
      _
    $region31: #{tpu_custom_call.1} parent=1 // pred_check_branch
      %242 = sbr.rel (0) target = $region33
    $region32: #{tpu_custom_call.1} parent=1 // pred_region
      %243 = dma.done [#allocation4], 128
    $region33: #{tpu_custom_call.1} parent=1 // pred_fallthru
      _
    %244 = vsyncpa [#allocation3], 1
    %245 = vsyncpa [#allocation4], 1

</llo_original>
